<compile_context>
chip_gen: v7x
topology: tpu7x:2x2x1
jax: 0.10.0
libtpu: 0.0.40
codegen_flags: <defaults>
</compile_context>

<pallas_src>
import jax
import jax.numpy as jnp
from jax.experimental import pallas as pl
from jax.experimental.pallas import tpu as pltpu


def _round_up(x, m):
    return ((x + m - 1) // m) * m


def _cdiv(a, b):
    return -(-a // b)


def _vmem_capacity_bytes():
    """Per-core VMEM capacity; conservative (v7x-sized) fallback so a tile
    sized against it never overflows any generation."""
    try:
        info = pltpu.get_tpu_info()
        cap = getattr(info, "vmem_capacity_bytes", None)
        if cap:
            return int(cap)
    except Exception:
        pass
    return 64 * 1024 * 1024


def _make_attention_kernel(T, tile_t, needs_t_mask):
    def kernel(x_ref, w_ref, o_ref, m_ref, l_ref, acc_ref):
        # x_ref: (tile_b, tile_t, D) block; w_ref: (1, 1, D); o_ref: (tile_b, D)
        # m/l/acc: online-softmax carry (f32), persist across the T grid axis.
        t = pl.program_id(1)

        @pl.when(t == 0)
        def _init():
            m_ref[...] = jnp.full_like(m_ref, -jnp.inf)
            l_ref[...] = jnp.zeros_like(l_ref)
            acc_ref[...] = jnp.zeros_like(acc_ref)

        x = x_ref[...]            # (tile_b, tile_t, D), input dtype
        w = w_ref[...]            # (1, 1, D), input dtype

        if needs_t_mask:
            # The last T block sticks out past the sequence: zero the padded
            # time rows of x and force their scores to -inf (zero weight).
            pos = t * tile_t + jax.lax.broadcasted_iota(
                jnp.int32, (x.shape[0], tile_t), 1)           # (tile_b, tile_t)
            valid = pos < T
            x = jnp.where(valid[..., None], x, jnp.zeros((), x.dtype))

        # Linear(D -> 1); the bias is folded away (softmax shift invariance).
        # Lane (D) reduction with an f32 accumulator; result is lane-dense
        # (tile_b, tile_t) so the softmax ops run on full vregs.
        scores = jnp.sum(x * w, axis=-1, dtype=jnp.float32)   # (tile_b, tile_t)
        if needs_t_mask:
            scores = jnp.where(valid, scores, -jnp.inf)

        # Online (streaming) softmax over the time axis.
        m_prev = m_ref[...]                                    # (tile_b, 1)
        m_new = jnp.maximum(m_prev, jnp.max(scores, axis=-1, keepdims=True))
        alpha = jnp.exp(m_prev - m_new)                        # (tile_b, 1)
        p = jnp.exp(scores - m_new)                            # (tile_b, tile_t)
        l_ref[...] = alpha * l_ref[...] + jnp.sum(p, axis=-1, keepdims=True)
        # p is f32, so p * x promotes to f32: the T reduction accumulates f32.
        acc_ref[...] = alpha * acc_ref[...] + jnp.sum(p[..., None] * x, axis=1)
        m_ref[...] = m_new

        @pl.when(t == pl.num_programs(1) - 1)
        def _finalize():
            # Only tile_b scalars are inverted: keep the exact reciprocal
            # (approx error would propagate into ctx and it costs nothing).
            inv = pl.reciprocal(l_ref[...], approx=False)
            o_ref[...] = (acc_ref[...] * inv).astype(o_ref.dtype)

    return kernel


def _choose_tile_b(B, tile_t, D, itemsize, per_buffer_budget, granule):
    """Batch tile sized against the *padded* VMEM footprint of one input
    block.  Priorities: minimal padded batch (extra HBM traffic on every
    chip), then an even number of >= 2 grid steps (v7x megacore balance),
    then the largest tile (fewest per-step overheads)."""
    d_pad = _round_up(D, 128)
    t_pad = _round_up(tile_t, granule)
    row_bytes = t_pad * d_pad * itemsize          # padded bytes per batch row
    max_tile = (per_buffer_budget // max(row_bytes, 1)) // granule * granule
    max_tile = max(granule, min(1024, max_tile))
    b_pad_g = _round_up(B, granule)
    max_tile = min(max_tile, b_pad_g)

    candidates = set(range(granule, max_tile + 1, granule))
    if 0 < B <= max_tile:
        candidates.add(B)                         # full-dim block: zero padding

    def score(tile):
        b_pad = _round_up(B, tile)
        steps = b_pad // tile
        if steps >= 2 and steps % 2 == 0:
            penalty = 0          # even split keeps both v7x TensorCores busy
        elif steps >= 2:
            penalty = 1
        else:
            penalty = 2 if b_pad_g >= 2 * granule else 0
        return (b_pad, penalty, -tile)

    return min(candidates, key=score)


def attention_forward(lstm_out, weight, bias=None, *,
                      per_buffer_budget=None, vmem_limit_bytes=None):
    """lstm_out: (B, T, D); weight: (D,) = Linear(D, 1).weight; bias: scalar.
    Returns the (B, D) context vectors (same dtype as lstm_out)."""
    del bias  # softmax(x.w + b) == softmax(x.w): the bias cancels exactly
    B, T, D = lstm_out.shape
    dtype = lstm_out.dtype
    itemsize = jnp.dtype(dtype).itemsize
    d_pad = _round_up(D, 128)
    granule = max(8, 32 // itemsize)   # sublane granularity: f32->8, bf16->16

    # Generation-aware VMEM budget.
    cap = _vmem_capacity_bytes()
    if vmem_limit_bytes is None:
        vmem_limit_bytes = min((cap * 3) // 4, 96 * 1024 * 1024)
    if per_buffer_budget is None:
        # x is double-buffered; leave the remaining third of the limit for the
        # output block, weight, f32 accumulators and compiler internals.
        per_buffer_budget = vmem_limit_bytes // 3

    # Time tiling: stream over T with the online softmax only when a minimal
    # batch block over the full sequence would not fit the budget.
    if granule * _round_up(T, granule) * d_pad * itemsize <= per_buffer_budget:
        tile_t = T
    else:
        tile_t = (per_buffer_budget // (granule * d_pad * itemsize))
        tile_t = tile_t // granule * granule
        tile_t = max(granule, min(_round_up(T, granule), tile_t))
    grid_t = _cdiv(T, tile_t)
    needs_t_mask = (T % tile_t) != 0

    tile_b = _choose_tile_b(B, tile_t, D, itemsize, per_buffer_budget, granule)
    B_pad = _round_up(B, tile_b)
    x = lstm_out
    if B_pad != B:
        # Zero rows -> uniform softmax over zero data -> zero context rows,
        # sliced away below; correctness-neutral.
        x = jnp.pad(x, ((0, B_pad - B), (0, 0), (0, 0)))

    w3d = weight.reshape(1, 1, D).astype(dtype)

    # Guard: make sure the chosen (padded) blocks fit the scoped VMEM limit
    # even when the tile_b floor was hit for extreme shapes.
    in_block = tile_b * _round_up(tile_t, granule) * d_pad * itemsize
    out_block = _round_up(tile_b, granule) * d_pad * itemsize
    scratch_bytes = (_round_up(tile_b, 8) * d_pad * 4
                     + 2 * _round_up(tile_b, 8) * 128 * 4)
    required = 2 * in_block + 2 * out_block + scratch_bytes + (2 << 20)
    vmem_limit_bytes = min(max(int(vmem_limit_bytes), required), cap)

    kernel = _make_attention_kernel(T, tile_t, needs_t_mask)

    out = pl.pallas_call(
        kernel,
        out_shape=jax.ShapeDtypeStruct((B_pad, D), dtype),
        grid_spec=pltpu.PrefetchScalarGridSpec(
            num_scalar_prefetch=0,
            grid=(B_pad // tile_b, grid_t),
            in_specs=[
                pl.BlockSpec((tile_b, tile_t, D), lambda b, t: (b, t, 0)),
                pl.BlockSpec((1, 1, D), lambda b, t: (0, 0, 0)),
            ],
            out_specs=pl.BlockSpec((tile_b, D), lambda b, t: (b, 0)),
            scratch_shapes=[
                pltpu.VMEM((tile_b, 1), jnp.float32),   # running max  m
                pltpu.VMEM((tile_b, 1), jnp.float32),   # running sum  l
                pltpu.VMEM((tile_b, D), jnp.float32),   # running context
            ],
        ),
        compiler_params=pltpu.CompilerParams(
            dimension_semantics=("parallel", "arbitrary"),
            vmem_limit_bytes=int(vmem_limit_bytes),
        ),
    )(x, w3d)
    return out[:B]


def attention_reference(lstm_out, weight, bias):
    x = lstm_out.astype(jnp.float32)
    scores = jnp.einsum("btd,d->bt", x, weight.astype(jnp.float32)) + bias
    attn = jax.nn.softmax(scores, axis=1)[..., None]
    return jnp.sum(attn * x, axis=1)


if __name__ == "__main__":
    # TODO(synk): the PyTorch module's print() side effects (attention weights
    # and context vector) are not replicated.
    lstm_hidden_size = 16
    B, T = 2, 8
    D = lstm_hidden_size * 2  # 32

    key = jax.random.PRNGKey(0)
    k_x, k_w, k_b = jax.random.split(key, 3)

    lstm_out = jax.random.normal(k_x, (B, T, D), dtype=jnp.float32)
    # PyTorch-style Linear(2H, 1) init: uniform(-1/sqrt(in), 1/sqrt(in)).
    bound = 1.0 / (D ** 0.5)
    weight = jax.random.uniform(k_w, (D,), jnp.float32, -bound, bound)
    bias = jax.random.uniform(k_b, (), jnp.float32, -bound, bound)

    ctx = jax.block_until_ready(attention_forward(lstm_out, weight, bias))
    ref = attention_reference(lstm_out, weight, bias)
    assert ctx.shape == (B, D)
    assert jnp.allclose(ctx, ref, atol=1e-5, rtol=1e-5)

    # Larger batch: exercises the batch-tile chooser (full-dim tile, no pad).
    B2, T2, D2 = 20, 12, 64
    k_x2, k_w2, k_b2 = jax.random.split(jax.random.PRNGKey(1), 3)
    x2 = jax.random.normal(k_x2, (B2, T2, D2), dtype=jnp.float32)
    w2 = jax.random.uniform(k_w2, (D2,), jnp.float32, -0.2, 0.2)
    b2 = jax.random.uniform(k_b2, (), jnp.float32, -0.2, 0.2)
    ref2 = attention_reference(x2, w2, b2)
    ctx2 = jax.block_until_ready(attention_forward(x2, w2, b2))
    assert ctx2.shape == (B2, D2)
    assert jnp.allclose(ctx2, ref2, atol=1e-5, rtol=1e-5)

    # Force the streaming (T-tiled, online-softmax) path with batch padding
    # and a masked final time block, by shrinking the per-buffer budget.
    ctx3 = jax.block_until_ready(
        attention_forward(x2, w2, b2, per_buffer_budget=32 * 1024))
    assert jnp.allclose(ctx3, ref2, atol=1e-5, rtol=1e-5)

    # bf16 inputs: the kernel accumulates both reductions in f32.
    B4, T4, D4 = 8, 32, 64
    k_x4, k_w4, _ = jax.random.split(jax.random.PRNGKey(2), 3)
    x4 = jax.random.normal(k_x4, (B4, T4, D4), dtype=jnp.bfloat16)
    w4 = jax.random.uniform(k_w4, (D4,), jnp.float32, -0.2, 0.2).astype(jnp.bfloat16)
    b4 = jnp.zeros((), jnp.float32)
    ref4 = attention_reference(x4.astype(jnp.float32), w4.astype(jnp.float32), b4)
    ctx4 = jax.block_until_ready(attention_forward(x4, w4, b4))
    assert jnp.allclose(ctx4.astype(jnp.float32), ref4, atol=5e-2, rtol=5e-2)

    print("KERNEL_OK")
</pallas_src>

<mosaic_0001>
module attributes {stable_mosaic.version = 11 : i64} {
  func.func @kernel(%arg0: i32, %arg1: i32, %arg2: memref<2x8x32xf32, #tpu.memory_space<vmem>>, %arg3: memref<1x1x32xf32, #tpu.memory_space<vmem>>, %arg4: memref<2x32xf32, #tpu.memory_space<vmem>>, %arg5: memref<2x1xf32, #tpu.memory_space<vmem>>, %arg6: memref<2x1xf32, #tpu.memory_space<vmem>>, %arg7: memref<2x32xf32, #tpu.memory_space<vmem>>) attributes {dimension_semantics = [#tpu.dimension_semantics<parallel>, #tpu.dimension_semantics<arbitrary>], iteration_bounds = array<i64: 1, 1>, scalar_prefetch = 0 : i64, scratch_operands = 3 : i64, tpu.core_type = #tpu.core_type<tc>, window_params = [{transform_indices = @transform_0, window_bounds = array<i64: 2, 8, 32>}, {pipeline_mode = #tpu.pipeline_mode<synchronous>, transform_indices = @transform_1, window_bounds = array<i64: 1, 1, 32>}, {transform_indices = @transform_2, window_bounds = array<i64: 2, 32>}]} {
    %c0_i32 = arith.constant 0 : i32
    %0 = arith.cmpi eq, %arg1, %c0_i32 : i32
    %1 = arith.extui %0 : i1 to i32
    %c0_i32_0 = arith.constant 0 : i32
    %2 = arith.cmpi ne, %1, %c0_i32_0 : i32
    scf.if %2 {
      %cst_23 = arith.constant 0xFF800000 : f32
      %36 = vector.broadcast %cst_23 : f32 to vector<2x1xf32>
      %c0_24 = arith.constant 0 : index
      %c0_25 = arith.constant 0 : index
      %37 = vector.load %arg5[%c0_24, %c0_25] : memref<2x1xf32, #tpu.memory_space<vmem>>, vector<2x1xf32>
      tpu.vector_store %arg5[%c0_24, %c0_25], %36 {strides = array<i32>} : memref<2x1xf32, #tpu.memory_space<vmem>>, vector<2x1xf32>,
      %cst_26 = arith.constant 0.000000e+00 : f32
      %38 = vector.broadcast %cst_26 : f32 to vector<2x1xf32>
      %c0_27 = arith.constant 0 : index
      %c0_28 = arith.constant 0 : index
      %39 = vector.load %arg6[%c0_27, %c0_28] : memref<2x1xf32, #tpu.memory_space<vmem>>, vector<2x1xf32>
      tpu.vector_store %arg6[%c0_27, %c0_28], %38 {strides = array<i32>} : memref<2x1xf32, #tpu.memory_space<vmem>>, vector<2x1xf32>,
      %cst_29 = arith.constant 0.000000e+00 : f32
      %40 = vector.broadcast %cst_29 : f32 to vector<2x32xf32>
      %c0_30 = arith.constant 0 : index
      %c0_31 = arith.constant 0 : index
      %41 = vector.load %arg7[%c0_30, %c0_31] : memref<2x32xf32, #tpu.memory_space<vmem>>, vector<2x32xf32>
      tpu.vector_store %arg7[%c0_30, %c0_31], %40 {strides = array<i32>} : memref<2x32xf32, #tpu.memory_space<vmem>>, vector<2x32xf32>,
    } else {
    }
    %c0 = arith.constant 0 : index
    %c0_1 = arith.constant 0 : index
    %c0_2 = arith.constant 0 : index
    %3 = vector.load %arg2[%c0, %c0_1, %c0_2] : memref<2x8x32xf32, #tpu.memory_space<vmem>>, vector<2x8x32xf32>
    %c0_3 = arith.constant 0 : index
    %c0_4 = arith.constant 0 : index
    %c0_5 = arith.constant 0 : index
    %4 = vector.load %arg3[%c0_3, %c0_4, %c0_5] : memref<1x1x32xf32, #tpu.memory_space<vmem>>, vector<1x1x32xf32>
    %5 = vector.broadcast %4 : vector<1x1x32xf32> to vector<2x8x32xf32>
    %6 = arith.mulf %3, %5 : vector<2x8x32xf32>
    %cst = arith.constant dense<0.000000e+00> : vector<2x8xf32>
    %7 = vector.multi_reduction <add>, %6, %cst [2] : vector<2x8x32xf32> to vector<2x8xf32>
    %c0_6 = arith.constant 0 : index
    %c0_7 = arith.constant 0 : index
    %8 = vector.load %arg5[%c0_6, %c0_7] : memref<2x1xf32, #tpu.memory_space<vmem>>, vector<2x1xf32>
    %cst_8 = arith.constant dense<0xFF800000> : vector<2xf32>
    %9 = vector.multi_reduction <maximumf>, %7, %cst_8 [1] : vector<2x8xf32> to vector<2xf32>
    %10 = vector.shape_cast %9 : vector<2xf32> to vector<2x1xf32>
    %11 = arith.maximumf %8, %10 : vector<2x1xf32>
    %12 = arith.subf %8, %11 : vector<2x1xf32>
    %13 = math.exp %12 : vector<2x1xf32>
    %14 = vector.broadcast %11 : vector<2x1xf32> to vector<2x8xf32>
    %15 = arith.subf %7, %14 : vector<2x8xf32>
    %16 = math.exp %15 : vector<2x8xf32>
    %c0_9 = arith.constant 0 : index
    %c0_10 = arith.constant 0 : index
    %17 = vector.load %arg6[%c0_9, %c0_10] : memref<2x1xf32, #tpu.memory_space<vmem>>, vector<2x1xf32>
    %18 = arith.mulf %13, %17 : vector<2x1xf32>
    %cst_11 = arith.constant dense<0.000000e+00> : vector<2xf32>
    %19 = vector.multi_reduction <add>, %16, %cst_11 [1] : vector<2x8xf32> to vector<2xf32>
    %20 = vector.shape_cast %19 : vector<2xf32> to vector<2x1xf32>
    %21 = arith.addf %18, %20 : vector<2x1xf32>
    %c0_12 = arith.constant 0 : index
    %c0_13 = arith.constant 0 : index
    %22 = vector.load %arg6[%c0_12, %c0_13] : memref<2x1xf32, #tpu.memory_space<vmem>>, vector<2x1xf32>
    tpu.vector_store %arg6[%c0_12, %c0_13], %21 {strides = array<i32>} : memref<2x1xf32, #tpu.memory_space<vmem>>, vector<2x1xf32>,
    %c0_14 = arith.constant 0 : index
    %c0_15 = arith.constant 0 : index
    %23 = vector.load %arg7[%c0_14, %c0_15] : memref<2x32xf32, #tpu.memory_space<vmem>>, vector<2x32xf32>
    %24 = vector.broadcast %13 : vector<2x1xf32> to vector<2x32xf32>
    %25 = arith.mulf %24, %23 : vector<2x32xf32>
    %26 = vector.shape_cast %16 : vector<2x8xf32> to vector<2x8x1xf32>
    %27 = vector.broadcast %26 : vector<2x8x1xf32> to vector<2x8x32xf32>
    %28 = arith.mulf %27, %3 : vector<2x8x32xf32>
    %cst_16 = arith.constant dense<0.000000e+00> : vector<2x32xf32>
    %29 = vector.multi_reduction <add>, %28, %cst_16 [1] : vector<2x8x32xf32> to vector<2x32xf32>
    %30 = arith.addf %25, %29 : vector<2x32xf32>
    %c0_17 = arith.constant 0 : index
    %c0_18 = arith.constant 0 : index
    %31 = vector.load %arg7[%c0_17, %c0_18] : memref<2x32xf32, #tpu.memory_space<vmem>>, vector<2x32xf32>
    tpu.vector_store %arg7[%c0_17, %c0_18], %30 {strides = array<i32>} : memref<2x32xf32, #tpu.memory_space<vmem>>, vector<2x32xf32>,
    %c0_19 = arith.constant 0 : index
    %c0_20 = arith.constant 0 : index
    %32 = vector.load %arg5[%c0_19, %c0_20] : memref<2x1xf32, #tpu.memory_space<vmem>>, vector<2x1xf32>
    tpu.vector_store %arg5[%c0_19, %c0_20], %11 {strides = array<i32>} : memref<2x1xf32, #tpu.memory_space<vmem>>, vector<2x1xf32>,
    %c0_i32_21 = arith.constant 0 : i32
    %33 = arith.cmpi eq, %arg1, %c0_i32_21 : i32
    %34 = arith.extui %33 : i1 to i32
    %c0_i32_22 = arith.constant 0 : i32
    %35 = arith.cmpi ne, %34, %c0_i32_22 : i32
    scf.if %35 {
      %c0_23 = arith.constant 0 : index
      %c0_24 = arith.constant 0 : index
      %36 = vector.load %arg6[%c0_23, %c0_24] : memref<2x1xf32, #tpu.memory_space<vmem>>, vector<2x1xf32>
      %37 = tpu.reciprocal %36 : vector<2x1xf32> -> vector<2x1xf32>
      %c0_25 = arith.constant 0 : index
      %c0_26 = arith.constant 0 : index
      %38 = vector.load %arg7[%c0_25, %c0_26] : memref<2x32xf32, #tpu.memory_space<vmem>>, vector<2x32xf32>
      %39 = vector.broadcast %37 : vector<2x1xf32> to vector<2x32xf32>
      %40 = arith.mulf %38, %39 : vector<2x32xf32>
      %c0_27 = arith.constant 0 : index
      %c0_28 = arith.constant 0 : index
      %41 = vector.load %arg4[%c0_27, %c0_28] : memref<2x32xf32, #tpu.memory_space<vmem>>, vector<2x32xf32>
      tpu.vector_store %arg4[%c0_27, %c0_28], %40 {strides = array<i32>} : memref<2x32xf32, #tpu.memory_space<vmem>>, vector<2x32xf32>,
    } else {
    }
    return
  }
  func.func @transform_0(%arg0: i32, %arg1: i32) -> (i32, i32, i32) {
    %c0_i32 = arith.constant 0 : i32
    %c0_i32_0 = arith.constant 0 : i32
    return %arg0, %arg1, %c0_i32 : i32, i32, i32
  }
  func.func @transform_1(%arg0: i32, %arg1: i32) -> (i32, i32, i32) {
    %c0_i32 = arith.constant 0 : i32
    %c0_i32_0 = arith.constant 0 : i32
    %c0_i32_1 = arith.constant 0 : i32
    %c0_i32_2 = arith.constant 0 : i32
    return %c0_i32, %c0_i32_0, %c0_i32_1 : i32, i32, i32
  }
  func.func @transform_2(%arg0: i32, %arg1: i32) -> (i32, i32) {
    %c0_i32 = arith.constant 0 : i32
    %c0_i32_0 = arith.constant 0 : i32
    return %arg0, %c0_i32 : i32, i32
  }
}

</mosaic_0001>

<llo_original>
// kernel: tpu_custom_call.1
$region0: #{tpu_custom_call.1}
  #allocation0 [shape = 'u32[]', space=smem, size = 0x4, offset = 0x4, fixed_abs, tag = 'smem constant byte address 0x4 - core index']
  #allocation1 [shape = 'u32[144,128]{1,0:T(1,128)}', space=vmem, size = 0x12000, scoped, tag = 'internal scratch']
  #allocation2 [shape = 'f32[2,1]{1,0:T(2,128)}', space=vmem, size = 0x400, scoped, tag = 'scratch operand']
  #allocation3 [shape = 'f32[2,1]{1,0:T(2,128)}', space=vmem, size = 0x400, scoped, tag = 'scratch operand']
  #allocation4 [shape = 'f32[2,32]{1,0:T(2,128)}', space=vmem, size = 0x400, scoped, tag = 'scratch operand']
  %s0 = inlined_call_operand.hbm [shape: f32[2,8,32], index: 0, kind: input, shape index: {}]
  %s1 = inlined_call_operand.vmem [shape: f32[1,1,32], index: 1, kind: input, shape index: {}]
  %s2 = inlined_call_operand.hbm [shape: f32[2,32], index: 2, kind: output, shape index: {}]
  %s3 = sld [smem:[#allocation0]]
  $region30: #{tpu_custom_call.1} parent=0
    _
  %s5 = ssub.s32 1, %s3
  %s6 = scalar_select 0, %s5, %s3
  $region1: #{tpu_custom_call.1} parent=0
    #allocation5 [shape = 'u8[8192]{0}', space=vmem, size = 0x2000, scoped, tag = 'input window, operand 0, single buffered']
    #allocation6 [shape = 's32[1]{0}', space=sflag, size = 0x4, scoped, tag = 'scoped memory for tpu_custom_call.1']
    #allocation7 [shape = 's32[1]{0}', space=sflag, size = 0x4, scoped, tag = 'scoped memory for tpu_custom_call.1']
    #allocation8 [shape = 'u8[1024]{0}', space=vmem, size = 0x400, scoped, tag = 'output window, operand 0, single buffered']
    %7 = vsyncpa [#allocation6], 0
    %8 = vsyncpa [#allocation7], 0
    // Predicated region
    $region2: #{tpu_custom_call.1} parent=1 // pred_check
      _
    $region3: #{tpu_custom_call.1} parent=1 // pred_check_branch
      %10 = sbr.rel (0) target = $region5
    $region4: #{tpu_custom_call.1} parent=1 // pred_region
      %s12 = ssub.s32 256, 256
      %13 = vsyncadd [#allocation6], %s12
      %s14 = sshll.u32 [#allocation5], 4
      %s15 = int_to_ptr.vmem [resolvable:$true] %s14
      %20 = dma.hbm_to_vmem [thread:$0]  %s0, 256, %s15, [#allocation6], 128, 128, 8
    $region5: #{tpu_custom_call.1} parent=1 // pred_fallthru
      _
    // Predicated region
    $region6: #{tpu_custom_call.1} parent=1 // pred_check
      _
    $region7: #{tpu_custom_call.1} parent=1 // pred_check_branch
      %22 = sbr.rel (0) target = $region9
    $region8: #{tpu_custom_call.1} parent=1 // pred_region
      _
    $region9: #{tpu_custom_call.1} parent=1 // pred_fallthru
      _
    // Predicated region
    $region10: #{tpu_custom_call.1} parent=1 // pred_check
      _
    $region11: #{tpu_custom_call.1} parent=1 // pred_check_branch
      %24 = sbr.rel (0) target = $region13
    $region12: #{tpu_custom_call.1} parent=1 // pred_region
      %25 = dma.done [#allocation6], 256
    $region13: #{tpu_custom_call.1} parent=1 // pred_fallthru
      _
    %p26 = scmp.eq.s32.totalorder 0, 0
    // Predicated region
    $region14: #{tpu_custom_call.1} parent=1 // pred_check
      %p27 = pneg %p26
    $region15: #{tpu_custom_call.1} parent=1 // pred_check_branch
      %29 = sbr.rel (%p27) target = $region17
    $region16: #{tpu_custom_call.1} parent=1 // pred_region
      %vm30 = vcmask 1024
      %31 = vst.msk [vmem:[#allocation2] sm:$0x3] %vm30, -inf
      %32 = vst.msk [vmem:[#allocation3] sm:$0x3] %vm30, 0.0
      %vm33 = vcmask 254976
      %34 = vst.msk [vmem:[#allocation4] sm:$0x3] %vm33, 0.0
    $region17: #{tpu_custom_call.1} parent=1 // pred_fallthru
      _
    %v35 = vld [vmem:[#allocation5] sm:$0xff]
    %v36 = vld [vmem:[#allocation5 + $0x8] sm:$0xff]
    %v37 = vld [vmem:[%s1] sm:$0x1]
    %v39 = vlaneseq
    %v40 = vshrl.u32 %v39, 7
    %v41 = vsub.s32 0, %v40
    %v42 = vrot.slane %v37, %v41
    %v44 = vmul.f32 %v35, %v42
    %v45 = vmul.f32 %v36, %v42
    %vm46 = vcmask 261120
    %v47 = vsel %vm46, %v44, 0.0
    %48 = vadd.xlane.f32.xlu0 %v47
    %v49 = vpop.xlane.xlu0 %48
    %v50 = vsel %vm46, %v45, 0.0
    %51 = vadd.xlane.f32.xlu0 %v50
    %v52 = vpop.xlane.xlu0 %51
    %v53 = vld [vmem:[#allocation2] sm:$0x3]
    %v56 = vlaneseq
    %v57 = vand.u32 %v56, 127
    %v58 = vlaneseq
    %v59 = vshrl.u32 %v58, 7
    %v60 = vsub.s32 %v57, %v59
    %v61 = vrot.slane %v49, %v60
    %v62 = vlaneseq
    %v63 = vshrl.u32 %v62, 7
    %v64 = vsub.s32 %v57, %v63
    %v65 = vrot.slane %v52, %v64
    %vm66 = vcmask 1041409
    %v67 = vsel %vm66, %v65, %v61
    %vm69 = vcmask 58368
    %v70 = vsel %vm69, %v67, -inf
    %71 = vmax.xlane.f32.xlu0 %v70
    %v72 = vpop.xlane.xlu0 %71
    %v73 = vmax.f32 %v53, %v72
    %v74 = vsub.f32 %v53, %v73
    %v75 = vmul.f32 %v74, 1.442695
    %v76 = vpow.pop %v75
    %78 = vset.pattern.permute.xlu0 0
    %79 = vperm.xlu0 %78, %v73
    %v80 = vpop.permute.xlu0 %79
    %v81 = vlaneseq
    %v82 = vshrl.u32 %v81, 7
    %v83 = vsub.s32 0, %v82
    %v84 = vrot.slane %v80, %v83
    %v85 = vlaneseq
    %v86 = vshrl.u32 %v85, 7
    %v87 = vsub.s32 1, %v86
    %v88 = vrot.slane %v80, %v87
    %v91 = vsub.f32 %v49, %v84
    %v92 = vsub.f32 %v52, %v88
    %v93 = vmul.f32 %v91, 1.442695
    %v94 = vpow.pop %v93
    %v95 = vmul.f32 %v92, 1.442695
    %v96 = vpow.pop %v95
    %v97 = vld [vmem:[#allocation3] sm:$0x3]
    %v98 = vmul.f32 %v76, %v97
    %101 = vset.pattern.permute.xlu0 0
    %102 = vperm.xlu0 %101, %v94
    %v103 = vpop.permute.xlu0 %102
    %104 = vset.pattern.permute.xlu0 0
    %105 = vperm.xlu0 %104, %v96
    %v106 = vpop.permute.xlu0 %105
    %v107 = vlaneseq
    %v108 = vshrl.u32 %v107, 7
    %v109 = vsub.s32 %v57, %v108
    %v110 = vrot.slane %v103, %v109
    %v111 = vlaneseq
    %v112 = vshrl.u32 %v111, 7
    %v113 = vsub.s32 %v57, %v112
    %v114 = vrot.slane %v106, %v113
    %v115 = vsel %vm66, %v114, %v110
    %v117 = vsel %vm69, %v115, 0.0
    %118 = vadd.xlane.f32.xlu0 %v117
    %v119 = vpop.xlane.xlu0 %118
    %v120 = vadd.f32 %v98, %v119
    %vm121 = vcmask 1024
    %122 = vst.msk [vmem:[#allocation3] sm:$0x3] %vm121, %v120
    %v123 = vld [vmem:[#allocation4] sm:$0x3]
    %125 = vset.pattern.permute.xlu0 0
    %126 = vperm.xlu0 %125, %v76
    %v127 = vpop.permute.xlu0 %126
    %v129 = vmul.f32 %v127, %v123
    %v132 = vmul.f32 %v103, %v35
    %v133 = vmul.f32 %v106, %v36
    %v134 = vsel %vm46, %v132, 0.0
    %v135 = vrot.slane %v134, 4
    %v136 = vadd.f32 %v134, %v135
    %v137 = vrot.slane %v136, 2
    %v138 = vadd.f32 %v136, %v137
    %v139 = vrot.slane %v138, 1
    %v140 = vadd.f32 %v138, %v139
    %v141 = vsel %vm46, %v133, 0.0
    %v142 = vrot.slane %v141, 4
    %v143 = vadd.f32 %v141, %v142
    %v144 = vrot.slane %v143, 2
    %v145 = vadd.f32 %v143, %v144
    %v146 = vrot.slane %v145, 1
    %v147 = vadd.f32 %v145, %v146
    %v150 = vsel %vm66, %v147, %v140
    %v152 = vadd.f32 %v129, %v150
    %vm153 = vcmask 254976
    %154 = vst.msk [vmem:[#allocation4] sm:$0x3] %vm153, %v152
    %155 = vst.msk [vmem:[#allocation2] sm:$0x3] %vm121, %v73
    // Predicated region
    $region18: #{tpu_custom_call.1} parent=1 // pred_check
      %p156 = pneg %p26
    $region19: #{tpu_custom_call.1} parent=1 // pred_check_branch
      %158 = sbr.rel (%p156) target = $region21
    $region20: #{tpu_custom_call.1} parent=1 // pred_region
      %v159 = vld [vmem:[#allocation3] sm:$0x3]
      %v160 = vrcp.pop %v159
      %v161 = vld [vmem:[#allocation4] sm:$0x3]
      %163 = vset.pattern.permute.xlu0 0
      %164 = vperm.xlu0 %163, %v160
      %v165 = vpop.permute.xlu0 %164
      %v167 = vmul.f32 %v161, %v165
      %168 = vst.msk [vmem:[#allocation8] sm:$0x3] %vm153, %v167
    $region21: #{tpu_custom_call.1} parent=1 // pred_fallthru
      _
    // Predicated region
    $region22: #{tpu_custom_call.1} parent=1 // pred_check
      _
    $region23: #{tpu_custom_call.1} parent=1 // pred_check_branch
      %170 = sbr.rel (0) target = $region25
    $region24: #{tpu_custom_call.1} parent=1 // pred_region
      %s172 = ssub.s32 32, 32
      %173 = vsyncadd [#allocation7], %s172
      %s175 = sshll.u32 [#allocation8], 4
      %s176 = int_to_ptr.vmem [resolvable:$true] %s175
      %178 = dma.vmem_to_hbm [thread:$0]  %s176, 32, %s2, [#allocation7]
    $region25: #{tpu_custom_call.1} parent=1 // pred_fallthru
      _
    // Predicated region
    $region26: #{tpu_custom_call.1} parent=1 // pred_check
      _
    $region27: #{tpu_custom_call.1} parent=1 // pred_check_branch
      %180 = sbr.rel (0) target = $region29
    $region28: #{tpu_custom_call.1} parent=1 // pred_region
      %181 = dma.done [#allocation7], 32
    $region29: #{tpu_custom_call.1} parent=1 // pred_fallthru
      _
    %182 = vsyncpa [#allocation6], 1
    %183 = vsyncpa [#allocation7], 1

</llo_original>
